<compile_context>
chip_gen: v7x
topology: tpu7x:2x2x1
jax: 0.10.0
libtpu: 0.0.40
codegen_flags: <defaults>
</compile_context>

<pallas_src>
import functools
import math

import jax
import jax.numpy as jnp
from jax.experimental import pallas as pl
from jax.experimental.pallas import tpu as pltpu


# Sublane alignment by element size (f32 -> 8, bf16 -> 16, int8/fp8 -> 32).
_SUBLANE_ALIGN = {4: 8, 2: 16, 1: 32}


def _pe_add_kernel(x_ref, pe_ref, o_ref, *, n_rep):
    # x_ref / o_ref: (ts, gb*D)   pe_ref: (ts, D)
    # Replicate the pe tile across the gb batch copies that live along the
    # flattened lane axis (VMEM-only work), then do a lane-dense add + store.
    pe_tile = pe_ref[...]
    if n_rep > 1:
        pe_tile = jnp.tile(pe_tile, (1, n_rep))
    o_ref[...] = x_ref[...] + pe_tile


def make_positional_encoding(d_model, max_len=10000, dtype=jnp.float32):
    """Sinusoidal table, shape (max_len, d_model) (the PyTorch buffer minus
    its size-1 batch dim, which would only sublane-pad the TPU block).
    Build it directly in the model dtype so the forward pass never needs an
    extra slice/convert pass over HBM."""
    if d_model % 2 != 0:
        # PyTorch's reference has the same implicit even-d_model assumption
        # (pe[:, 1::2] would shape-mismatch for odd d_model).
        raise ValueError(f"d_model must be even, got {d_model}")
    position = jnp.arange(0, max_len, dtype=jnp.float32)[:, None]            # (L,1)
    div_term = jnp.exp(
        jnp.arange(0, d_model, 2, dtype=jnp.float32) * (-math.log(10000.0) / d_model)
    )                                                                         # (D/2,)
    ang = position * div_term                                                 # (L, D/2)
    pe = jnp.zeros((max_len, d_model), dtype=jnp.float32)
    pe = pe.at[:, 0::2].set(jnp.sin(ang))
    pe = pe.at[:, 1::2].set(jnp.cos(ang))
    return pe.astype(dtype)                                                   # (L, D)


def _pick_tiles(S, B, D, itemsize, target_block_bytes=4 << 20):
    """Pick (seq_tile, batch_group) for the flattened (S, B*D) view.

    * seq tile is a multiple of the dtype sublane alignment; the grid uses
      pl.cdiv so any S works (masked tail), never falling back to ts=S.
    * aim for >= 4 seq steps (pipelining overlap; both v7x TensorCores
      stream) while keeping blocks <= ~4 MiB.
    * if even an alignment-height block of all B row-copies is too big
      (huge B*D), split the batch into groups (second grid axis) — only when
      D is lane-aligned so the column block stays a multiple of 128.
    """
    align = _SUBLANE_ALIGN.get(itemsize, 8)
    d_bytes = D * itemsize

    gb = B
    if align * B * d_bytes > target_block_bytes and D % 128 == 0:
        gb = max(1, int(target_block_bytes // (align * d_bytes)))
        gb = min(gb, B)

    row_bytes = max(gb * d_bytes, 1)
    budget = max(align, (target_block_bytes // row_bytes) // align * align)
    # Prefer >= 4 grid steps along seq over a 1-2 step grid.
    quarter = max(align, (S // 4) // align * align)
    ts = max(align, min(budget, quarter))
    ts = min(ts, -(-S // align) * align)          # no bigger than S rounded up
    return int(ts), int(gb)


def positional_encoding_forward(x, pe, *, donate_x=False):
    """x: (S, B, D);  pe: (max_len, D).  Returns x + pe[:S] (broadcast over B)."""
    S, B, D = x.shape
    max_len, d_model = pe.shape
    if D != d_model:
        raise ValueError(f"d_model mismatch: x has {D}, pe has {d_model}")
    if S > max_len:
        raise ValueError(f"seq_len {S} exceeds positional table max_len {max_len}")
    if pe.dtype != x.dtype:
        # One-time safety conversion; build the table in the model dtype at
        # init (make_positional_encoding(dtype=...)) to avoid this extra pass.
        pe = pe.astype(x.dtype)

    itemsize = jnp.dtype(x.dtype).itemsize
    ts, gb = _pick_tiles(S, B, D, itemsize)
    grid = (pl.cdiv(S, ts), pl.cdiv(B, gb))

    # Lane-dense flattened view: (S, B*D).  Free for a contiguous array.
    x2 = x.reshape(S, B * D)

    # VMEM budget: double-buffered x in + out blocks, plus the (small) pe
    # block.  Cap at 48 MiB — headroom under v7x's 64 MiB physical VMEM and
    # more than enough on v5e/v6e at <=4 MiB blocks.
    x_blk_bytes = ts * gb * D * itemsize
    pe_blk_bytes = ts * D * itemsize
    vmem_need = 2 * (2 * x_blk_bytes + pe_blk_bytes)
    vmem_limit = int(min(max(vmem_need + (4 << 20), 16 << 20), 48 << 20))

    cost = pl.CostEstimate(
        flops=S * B * D,
        transcendentals=0,
        # read x + write out + read pe once per seq step (pe block index does
        # not change along the inner batch-group axis, so it is not refetched)
        bytes_accessed=(2 * S * B * D + grid[0] * ts * D) * itemsize,
    )

    kernel = functools.partial(_pe_add_kernel, n_rep=gb)

    out2 = pl.pallas_call(
        kernel,
        out_shape=jax.ShapeDtypeStruct((S, B * D), x.dtype),
        grid_spec=pltpu.PrefetchScalarGridSpec(
            num_scalar_prefetch=0,
            grid=grid,
            in_specs=[
                pl.BlockSpec((ts, gb * D), lambda i, j: (i, j)),   # x (flattened)
                pl.BlockSpec((ts, D), lambda i, j: (i, 0)),        # pe
            ],
            out_specs=pl.BlockSpec((ts, gb * D), lambda i, j: (i, j)),
        ),
        compiler_params=pltpu.CompilerParams(
            dimension_semantics=("parallel", "parallel"),
            vmem_limit_bytes=vmem_limit,
        ),
        cost_estimate=cost,
        input_output_aliases=({0: 0} if donate_x else {}),
    )(x2, pe)

    return out2.reshape(S, B, D)


if __name__ == "__main__":
    root = jax.random.PRNGKey(0)
    k1, k2, k3 = jax.random.split(root, 3)

    # Case 1: module-consistent small shape (seq=8, batch=2, d_model=32).
    S, B, D = 8, 2, 32
    pe = make_positional_encoding(D, max_len=64, dtype=jnp.float32)
    x = jax.random.normal(k1, (S, B, D), dtype=jnp.float32)
    out = jax.block_until_ready(positional_encoding_forward(x, pe))
    ref = x + pe[:S][:, None, :]
    assert out.shape == (S, B, D)
    assert jnp.allclose(out, ref, atol=1e-6), "mismatch vs reference (case 1)"

    # Case 2: multi-step seq grid (ts=8, 5 steps), lane-dense rows (B*D=256).
    S2, B2, D2 = 40, 2, 128
    pe2 = make_positional_encoding(D2, max_len=64, dtype=jnp.float32)
    x2 = jax.random.normal(k2, (S2, B2, D2), dtype=jnp.float32)
    out2 = jax.block_until_ready(positional_encoding_forward(x2, pe2))
    ref2 = x2 + pe2[:S2][:, None, :]
    assert jnp.allclose(out2, ref2, atol=1e-6), "mismatch vs reference (case 2)"

    # Case 3: ragged seq length (S not a multiple of 8) -> cdiv grid, masked tail.
    S3, B3, D3 = 36, 2, 128
    pe3 = make_positional_encoding(D3, max_len=64, dtype=jnp.float32)
    x3 = jax.random.normal(k3, (S3, B3, D3), dtype=jnp.float32)
    out3 = jax.block_until_ready(positional_encoding_forward(x3, pe3))
    ref3 = x3 + pe3[:S3][:, None, :]
    assert jnp.allclose(out3, ref3, atol=1e-6), "mismatch vs reference (case 3)"

    print("KERNEL_OK")
</pallas_src>

<mosaic_0001>
module attributes {stable_mosaic.version = 11 : i64} {
  func.func @_pe_add_kernel(%arg0: i32, %arg1: i32, %arg2: memref<8x64xf32, #tpu.memory_space<vmem>>, %arg3: memref<8x32xf32, #tpu.memory_space<vmem>>, %arg4: memref<8x64xf32, #tpu.memory_space<vmem>>) attributes {dimension_semantics = [#tpu.dimension_semantics<parallel>, #tpu.dimension_semantics<parallel>], iteration_bounds = array<i64: 1, 1>, scalar_prefetch = 0 : i64, scratch_operands = 0 : i64, tpu.core_type = #tpu.core_type<tc>, window_params = [{transform_indices = @transform_0, window_bounds = array<i64: 8, 64>}, {transform_indices = @transform_1, window_bounds = array<i64: 8, 32>}, {transform_indices = @transform_2, window_bounds = array<i64: 8, 64>}]} {
    %c0 = arith.constant 0 : index
    %c0_0 = arith.constant 0 : index
    %0 = vector.load %arg3[%c0, %c0_0] : memref<8x32xf32, #tpu.memory_space<vmem>>, vector<8x32xf32>
    %1 = tpu.concatenate %0, %0 in 1 : vector<8x32xf32>, vector<8x32xf32> -> vector<8x64xf32>
    %c0_1 = arith.constant 0 : index
    %c0_2 = arith.constant 0 : index
    %2 = vector.load %arg2[%c0_1, %c0_2] : memref<8x64xf32, #tpu.memory_space<vmem>>, vector<8x64xf32>
    %3 = arith.addf %2, %1 : vector<8x64xf32>
    %c0_3 = arith.constant 0 : index
    %c0_4 = arith.constant 0 : index
    %4 = vector.load %arg4[%c0_3, %c0_4] : memref<8x64xf32, #tpu.memory_space<vmem>>, vector<8x64xf32>
    tpu.vector_store %arg4[%c0_3, %c0_4], %3 {strides = array<i32>} : memref<8x64xf32, #tpu.memory_space<vmem>>, vector<8x64xf32>,
    return
  }
  func.func @transform_0(%arg0: i32, %arg1: i32) -> (i32, i32) {
    %c0_i32 = arith.constant 0 : i32
    return %arg0, %arg1 : i32, i32
  }
  func.func @transform_1(%arg0: i32, %arg1: i32) -> (i32, i32) {
    %c0_i32 = arith.constant 0 : i32
    %c0_i32_0 = arith.constant 0 : i32
    return %arg0, %c0_i32 : i32, i32
  }
  func.func @transform_2(%arg0: i32, %arg1: i32) -> (i32, i32) {
    %c0_i32 = arith.constant 0 : i32
    return %arg0, %arg1 : i32, i32
  }
}

</mosaic_0001>

<llo_original>
// kernel: tpu_custom_call.1
$region0: #{tpu_custom_call.1}
  #allocation0 [shape = 'u32[]', space=smem, size = 0x4, offset = 0x4, fixed_abs, tag = 'smem constant byte address 0x4 - core index']
  #allocation1 [shape = 'u32[144,128]{1,0:T(1,128)}', space=vmem, size = 0x12000, scoped, tag = 'internal scratch']
  %s0 = inlined_call_operand.vmem [shape: f32[8,64], index: 0, kind: input, shape index: {}]
  %s1 = inlined_call_operand.vmem [shape: f32[64,32], index: 1, kind: input, shape index: {}]
  %s2 = inlined_call_operand.hbm [shape: f32[8,64], index: 2, kind: output, shape index: {}]
  %s3 = sld [smem:[#allocation0]]
  $region18: #{tpu_custom_call.1} parent=0
    _
  %s5 = ssub.s32 1, %s3
  %s6 = scalar_select 0, %s5, %s3
  $region1: #{tpu_custom_call.1} parent=0
    #allocation2 [shape = 'u8[4096]{0}', space=vmem, size = 0x1000, scoped, tag = 'output window, operand 0, single buffered']
    #allocation3 [shape = 's32[1]{0}', space=sflag, size = 0x4, scoped, tag = 'scoped memory for tpu_custom_call.1']
    %7 = vsyncpa [#allocation3], 0
    // Predicated region
    $region2: #{tpu_custom_call.1} parent=1 // pred_check
      _
    $region3: #{tpu_custom_call.1} parent=1 // pred_check_branch
      %9 = sbr.rel (0) target = $region5
    $region4: #{tpu_custom_call.1} parent=1 // pred_region
      _
    $region5: #{tpu_custom_call.1} parent=1 // pred_fallthru
      _
    // Predicated region
    $region6: #{tpu_custom_call.1} parent=1 // pred_check
      _
    $region7: #{tpu_custom_call.1} parent=1 // pred_check_branch
      %11 = sbr.rel (0) target = $region9
    $region8: #{tpu_custom_call.1} parent=1 // pred_region
      _
    $region9: #{tpu_custom_call.1} parent=1 // pred_fallthru
      _
    %v12 = vld [vmem:[%s1] sm:$0xff]
    %14 = vrot.lane.b32.xlu0 %v12, 32
    %v15 = vpop.permute.xlu0 %14
    %vm17 = vcmask 261120
    %v18 = vsel %vm17, %v12, %v15
    %v19 = vld [vmem:[%s0] sm:$0xff]
    %v20 = vadd.f32 %v19, %v18
    %vm21 = vcmask 523264
    %22 = vst.msk [vmem:[#allocation2] sm:$0xff] %vm21, %v20
    // Predicated region
    $region10: #{tpu_custom_call.1} parent=1 // pred_check
      _
    $region11: #{tpu_custom_call.1} parent=1 // pred_check_branch
      %24 = sbr.rel (0) target = $region13
    $region12: #{tpu_custom_call.1} parent=1 // pred_region
      %s26 = ssub.s32 128, 128
      %27 = vsyncadd [#allocation3], %s26
      %s29 = sshll.u32 [#allocation2], 4
      %s30 = int_to_ptr.vmem [resolvable:$true] %s29
      %32 = dma.vmem_to_hbm [thread:$0]  %s30, 128, %s2, [#allocation3]
    $region13: #{tpu_custom_call.1} parent=1 // pred_fallthru
      _
    // Predicated region
    $region14: #{tpu_custom_call.1} parent=1 // pred_check
      _
    $region15: #{tpu_custom_call.1} parent=1 // pred_check_branch
      %34 = sbr.rel (0) target = $region17
    $region16: #{tpu_custom_call.1} parent=1 // pred_region
      %35 = dma.done [#allocation3], 128
    $region17: #{tpu_custom_call.1} parent=1 // pred_fallthru
      _
    %36 = vsyncpa [#allocation3], 1

</llo_original>
